<compile_context>
chip_gen: v7x
topology: tpu7x:2x2x1
jax: 0.10.0
libtpu: 0.0.40
codegen_flags: <defaults>
</compile_context>

<pallas_src>
import math

import jax
import jax.numpy as jnp
import numpy as np
from jax.experimental import pallas as pl
from jax.experimental.pallas import tpu as pltpu

# -----------------------------------------------------------------------------
# Config (small shapes consistent with the module's forward)
# -----------------------------------------------------------------------------
B = 2             # batch
C = 4             # in_channel == out_channel
H = W = 16        # img_size (small synthetic)
HW = H * W        # 256 -> lane axis
COND = 32         # cond_channel (encoder output / style dim)
HID = 32          # hidden width of synthetic eps predictor
T = 1000          # diffusion steps

SLAB_ROWS = max(HID, COND)          # 32 (HID == COND == 32 here)
assert SLAB_ROWS % 8 == 0 and HID == SLAB_ROWS and COND == SLAB_ROWS

# Static weight-slab column layout: every matrix that feeds the MXU starts at a
# 128-lane tile boundary; the 4 bias columns share tile 0's spare lanes.
L_CT = 0                 # (HID, COND+HID)  fused [wc^T | wt^T]      (lanes 0..63)
L_BIAS = COND + HID      # benc / bemb / bin / bout columns          (lanes 64..67)
L_ENC = 128              # (COND, C)  wenc^T                         (lane-tile 1)
L_IN = 256               # (HID,  C)  win^T                          (lane-tile 2)
L_OUT = 384              # (C,  HID)  wout^T                         (lane-tile 3)
SLAB_LANES = 512
assert L_OUT + HID <= SLAB_LANES and L_BIAS + 4 <= 128

# Per-call (per-step) slab: per-sample columns [temb | sqrt_acp | sqrt_1macp | pad].
DYN_LANES = 4

OUT_ROWS = 8             # pad the per-sample loss block to a full (8,128) tile
OUT_LANES = 128


# -----------------------------------------------------------------------------
# Pallas kernel: fused q_sample + encoder + conditional eps-predictor + MSE loss.
# One grid step == one sample.  Activations are (C, HW) / (HID, HW): channels on
# sublanes, the HW=256 pixel axis on lanes; weights keep their true (shared) shapes.
# -----------------------------------------------------------------------------
def _diffae_loss_kernel(xs_ref, nz_ref, w_ref, dyn_ref, out_ref):
    xs = xs_ref[0]                                   # (C, HW)   x_start
    nz = nz_ref[0]                                   # (C, HW)   noise
    dyn = dyn_ref[0]                                 # (HID, DYN_LANES)

    temb_col = dyn[:, 0:1]                           # (HID, 1)  sinusoidal t-embedding
    a_col = dyn[0:C, 1:2]                            # (C, 1)    sqrt(alphas_cumprod[t])
    s_col = dyn[0:C, 2:3]                            # (C, 1)    sqrt(1 - alphas_cumprod[t])

    # --- q_sample: x_t = sqrt(acp)*x0 + sqrt(1-acp)*eps -----------------------------
    x_t = a_col * xs + s_col * nz                    # (C, HW)

    # --- encoder(x_start): global average pool (lane reduce) + linear ---------------
    pooled = jnp.sum(xs, axis=1, keepdims=True) * (1.0 / HW)                # (C, 1)
    wenc_t = w_ref[:, L_ENC:L_ENC + C]                                      # (COND, C)
    benc = w_ref[:, L_BIAS + 0:L_BIAS + 1]                                  # (COND, 1)
    cond = jnp.dot(wenc_t, pooled, preferred_element_type=jnp.float32) + benc

    # --- fused conditioning: emb = [wc^T | wt^T] @ [cond ; temb] + bemb ; SiLU -------
    w_ct = w_ref[:, L_CT:L_CT + COND + HID]                                 # (HID, 64)
    bemb = w_ref[:, L_BIAS + 1:L_BIAS + 2]                                  # (HID, 1)
    rhs = jnp.concatenate([cond, temb_col], axis=0)                         # (64, 1)
    emb = jnp.dot(w_ct, rhs, preferred_element_type=jnp.float32) + bemb     # (HID, 1)
    emb = emb * jax.nn.sigmoid(emb)                                         # SiLU (EUP)

    # --- eps predictor: 1x1 conv -> +emb -> SiLU -> 1x1 conv (shared weights) -------
    win_t = w_ref[:, L_IN:L_IN + C]                                         # (HID, C)
    b_in = w_ref[:, L_BIAS + 2:L_BIAS + 3]                                  # (HID, 1)
    h = jnp.dot(win_t, x_t, preferred_element_type=jnp.float32) + (b_in + emb)
    h = h * jax.nn.sigmoid(h)                                               # (HID, HW)

    wout_t = w_ref[0:C, L_OUT:L_OUT + HID]                                  # (C, HID)
    bout = w_ref[0:C, L_BIAS + 3:L_BIAS + 4]                                # (C, 1)
    eps_pred = jnp.dot(wout_t, h, preferred_element_type=jnp.float32) + bout  # (C, HW)

    # --- per-sample MSE over (C, H, W): lane reduce + sublane reduce (no MXU tail) ---
    d = nz - eps_pred
    per_row = jnp.sum(d * d, axis=1, keepdims=True)                         # (C, 1)
    loss = jnp.sum(per_row, axis=0, keepdims=True) * (1.0 / (C * HW))       # (1, 1)

    # single unmasked (8,128) store; wrapper reads [:, 0, 0]
    out_ref[...] = jnp.broadcast_to(loss.reshape(1, 1, 1), out_ref.shape)


# -----------------------------------------------------------------------------
# Host-side slab packing (ONE TIME per parameter update, outside the jitted step)
# -----------------------------------------------------------------------------
def pack_weight_slab(params):
    p = {k: np.asarray(v, np.float32) for k, v in params.items()}
    slab = np.zeros((SLAB_ROWS, SLAB_LANES), np.float32)
    slab[:HID, L_CT:L_CT + COND] = p["wc"].T                 # (HID, COND)
    slab[:HID, L_CT + COND:L_CT + COND + HID] = p["wt"].T    # (HID, HID)
    slab[:COND, L_BIAS + 0] = p["benc"]
    slab[:HID, L_BIAS + 1] = p["bemb"]
    slab[:HID, L_BIAS + 2] = p["bin"]
    slab[:C, L_BIAS + 3] = p["bout"]
    slab[:COND, L_ENC:L_ENC + C] = p["wenc"].T               # (COND, C)
    slab[:HID, L_IN:L_IN + C] = p["win"].T                   # (HID, C)
    slab[:C, L_OUT:L_OUT + HID] = p["wout"].T                # (C, HID)
    return jnp.asarray(slab)


def pack_dynamic_slab(temb, a_t, s_t):
    """Per-call data only: one jnp.stack -> (B, HID, DYN_LANES)."""
    temb_f = temb.astype(jnp.float32)                                        # (B, HID)
    a_rep = jnp.broadcast_to(a_t.astype(jnp.float32)[:, None], (B, HID))
    s_rep = jnp.broadcast_to(s_t.astype(jnp.float32)[:, None], (B, HID))
    pad = jnp.zeros((B, HID), jnp.float32)
    return jnp.stack([temb_f, a_rep, s_rep, pad], axis=-1)                   # (B, HID, 4)


@jax.jit
def diffae_training_loss(x_nchw, noise_nchw, a_t, s_t, temb, wslab):
    """x_nchw / noise_nchw: (B, C, H, W) f32; wslab prebuilt; returns per-sample loss (B,)."""
    # pure reshape: HW=256 rides the lane axis, channels on sublanes
    xs = x_nchw.astype(jnp.float32).reshape(B, C, HW)
    nz = noise_nchw.astype(jnp.float32).reshape(B, C, HW)
    dyn = pack_dynamic_slab(temb, a_t, s_t)

    out = pl.pallas_call(
        _diffae_loss_kernel,
        out_shape=jax.ShapeDtypeStruct((B, OUT_ROWS, OUT_LANES), jnp.float32),
        grid=(B,),
        in_specs=[
            pl.BlockSpec((1, C, HW), lambda b: (b, 0, 0)),                 # x_start (pipelined)
            pl.BlockSpec((1, C, HW), lambda b: (b, 0, 0)),                 # noise   (pipelined)
            pl.BlockSpec((SLAB_ROWS, SLAB_LANES), lambda b: (0, 0)),       # weights: DMA'd once, VMEM-resident
            pl.BlockSpec((1, HID, DYN_LANES), lambda b: (b, 0, 0)),        # per-sample temb / scales
        ],
        out_specs=pl.BlockSpec((1, OUT_ROWS, OUT_LANES), lambda b: (b, 0, 0)),
        # At B=2 keep the batch axis on one core (8 sublanes of work); switch to
        # ("parallel",) once the batch fills full (8,128) tiles per v7x TensorCore.
        compiler_params=pltpu.CompilerParams(dimension_semantics=("arbitrary",)),
    )(xs, nz, wslab, dyn)
    return out[:, 0, 0]


# -----------------------------------------------------------------------------
# Glue: schedule, timestep sampling/embedding, synthetic model parameters
# -----------------------------------------------------------------------------
def linear_beta_schedule(T):
    scale = 1000.0 / T
    betas = np.linspace(scale * 1e-4, scale * 2e-2, T, dtype=np.float64)
    acp = np.cumprod(1.0 - betas)
    return (jnp.asarray(np.sqrt(acp), jnp.float32),
            jnp.asarray(np.sqrt(1.0 - acp), jnp.float32))


def sinusoidal_embedding(t, dim):
    half = dim // 2
    freqs = jnp.exp(-math.log(10000.0) * jnp.arange(half, dtype=jnp.float32) / half)
    args = t.astype(jnp.float32)[:, None] * freqs[None, :]
    return jnp.concatenate([jnp.cos(args), jnp.sin(args)], axis=-1)   # (B, dim)


def init_params(key):
    ks = jax.random.split(key, 9)

    def dense(k, fan_in, shape):
        return jax.random.normal(k, shape, jnp.float32) / math.sqrt(fan_in)

    return {
        "wenc": dense(ks[0], C, (C, COND)),
        "benc": 0.1 * jax.random.normal(ks[1], (COND,), jnp.float32),
        "wc":   dense(ks[2], COND, (COND, HID)),
        "wt":   dense(ks[3], HID, (HID, HID)),
        "bemb": 0.1 * jax.random.normal(ks[4], (HID,), jnp.float32),
        "win":  dense(ks[5], C, (C, HID)),
        "bin":  0.1 * jax.random.normal(ks[6], (HID,), jnp.float32),
        "wout": dense(ks[7], HID, (HID, C)),
        "bout": 0.1 * jax.random.normal(ks[8], (C,), jnp.float32),
    }


def reference_loss(x, noise, a, s, temb, p):
    """Pure-JAX reference of the same forward (NCHW), for correctness checking."""
    x_t = a[:, None, None, None] * x + s[:, None, None, None] * noise
    pooled = jnp.mean(x, axis=(2, 3))                                  # (B, C)
    cond = pooled @ p["wenc"] + p["benc"]                              # (B, COND)
    emb = cond @ p["wc"] + temb @ p["wt"] + p["bemb"]                  # (B, HID)
    emb = emb * jax.nn.sigmoid(emb)
    xtr = x_t.reshape(B, C, HW)
    h = (jnp.einsum("ck,bcp->bkp", p["win"], xtr)
         + p["bin"][None, :, None] + emb[:, :, None])                  # (B, HID, HW)
    h = h * jax.nn.sigmoid(h)
    eps = jnp.einsum("kc,bkp->bcp", p["wout"], h) + p["bout"][None, :, None]
    d = noise.reshape(B, C, HW) - eps
    return jnp.mean(d * d, axis=(1, 2))


# -----------------------------------------------------------------------------
if __name__ == "__main__":
    root = jax.random.PRNGKey(0)
    k_x, k_t, k_noise, k_params = jax.random.split(root, 4)

    # PyTorch-style NCHW input
    x_start = jax.random.normal(k_x, (B, C, H, W), jnp.float32)
    noise = jax.random.normal(k_noise, (B, C, H, W), jnp.float32)

    # T_sampler == UniformSampler: t ~ Uniform{0..T-1}
    t = jax.random.randint(k_t, (B,), 0, T)

    sqrt_acp, sqrt_1macp = linear_beta_schedule(T)
    a_t = sqrt_acp[t]
    s_t = sqrt_1macp[t]
    temb = sinusoidal_embedding(t, HID)

    params = init_params(k_params)

    # One-time packing (per parameter update), NOT in the per-step jitted path.
    wslab = pack_weight_slab(params)

    loss = diffae_training_loss(x_start, noise, a_t, s_t, temb, wslab)
    loss = jax.block_until_ready(loss)

    ref = jax.block_until_ready(reference_loss(x_start, noise, a_t, s_t, temb, params))
    np.testing.assert_allclose(np.asarray(loss), np.asarray(ref), rtol=1e-4, atol=1e-5)

    # TODO(synk): the real diffusion_model is an external inception-resnet-v2 UNet;
    # it is synthesized here as a small conditional eps-predictor with identical
    # training-loss semantics (q_sample -> eps prediction -> per-sample MSE).
    print("KERNEL_OK")
</pallas_src>

<mosaic_0001>
module attributes {stable_mosaic.version = 11 : i64} {
  func.func @_diffae_loss_kernel(%arg0: i32, %arg1: memref<1x4x256xf32, #tpu.memory_space<vmem>>, %arg2: memref<1x4x256xf32, #tpu.memory_space<vmem>>, %arg3: memref<32x512xf32, #tpu.memory_space<vmem>>, %arg4: memref<1x32x4xf32, #tpu.memory_space<vmem>>, %arg5: memref<1x8x128xf32, #tpu.memory_space<vmem>>) attributes {dimension_semantics = [#tpu.dimension_semantics<arbitrary>], iteration_bounds = array<i64: 2>, scalar_prefetch = 0 : i64, scratch_operands = 0 : i64, tpu.core_type = #tpu.core_type<tc>, window_params = [{transform_indices = @transform_0, window_bounds = array<i64: 1, 4, 256>}, {transform_indices = @transform_1, window_bounds = array<i64: 1, 4, 256>}, {pipeline_mode = #tpu.pipeline_mode<synchronous>, transform_indices = @transform_2, window_bounds = array<i64: 32, 512>}, {transform_indices = @transform_3, window_bounds = array<i64: 1, 32, 4>}, {transform_indices = @transform_4, window_bounds = array<i64: 1, 8, 128>}]} {
    %c0 = arith.constant 0 : index
    %c0_0 = arith.constant 0 : index
    %c0_1 = arith.constant 0 : index
    %0 = vector.load %arg1[%c0, %c0_0, %c0_1] : memref<1x4x256xf32, #tpu.memory_space<vmem>>, vector<1x4x256xf32>
    %1 = vector.shape_cast %0 : vector<1x4x256xf32> to vector<4x256xf32>
    %c0_2 = arith.constant 0 : index
    %c0_3 = arith.constant 0 : index
    %c0_4 = arith.constant 0 : index
    %2 = vector.load %arg2[%c0_2, %c0_3, %c0_4] : memref<1x4x256xf32, #tpu.memory_space<vmem>>, vector<1x4x256xf32>
    %3 = vector.shape_cast %2 : vector<1x4x256xf32> to vector<4x256xf32>
    %c0_5 = arith.constant 0 : index
    %c0_6 = arith.constant 0 : index
    %c0_7 = arith.constant 0 : index
    %4 = vector.load %arg4[%c0_5, %c0_6, %c0_7] : memref<1x32x4xf32, #tpu.memory_space<vmem>>, vector<1x32x4xf32>
    %5 = vector.shape_cast %4 : vector<1x32x4xf32> to vector<32x4xf32>
    %6 = vector.extract_strided_slice %5 {offsets = [0, 0], sizes = [32, 1], strides = [1, 1]} : vector<32x4xf32> to vector<32x1xf32>
    %7 = vector.extract_strided_slice %5 {offsets = [0, 1], sizes = [4, 1], strides = [1, 1]} : vector<32x4xf32> to vector<4x1xf32>
    %8 = vector.extract_strided_slice %5 {offsets = [0, 2], sizes = [4, 1], strides = [1, 1]} : vector<32x4xf32> to vector<4x1xf32>
    %9 = vector.broadcast %7 : vector<4x1xf32> to vector<4x256xf32>
    %10 = arith.mulf %9, %1 : vector<4x256xf32>
    %11 = vector.broadcast %8 : vector<4x1xf32> to vector<4x256xf32>
    %12 = arith.mulf %11, %3 : vector<4x256xf32>
    %13 = arith.addf %10, %12 : vector<4x256xf32>
    %cst = arith.constant dense<0.000000e+00> : vector<4xf32>
    %14 = vector.multi_reduction <add>, %1, %cst [1] : vector<4x256xf32> to vector<4xf32>
    %15 = vector.shape_cast %14 : vector<4xf32> to vector<4x1xf32>
    %cst_8 = arith.constant 3.906250e-03 : f32
    %16 = vector.broadcast %cst_8 : f32 to vector<4x1xf32>
    %17 = arith.mulf %15, %16 : vector<4x1xf32>
    %c0_9 = arith.constant 0 : index
    %c128 = arith.constant 128 : index
    %18 = vector.load %arg3[%c0_9, %c128] : memref<32x512xf32, #tpu.memory_space<vmem>>, vector<32x4xf32>
    %c0_10 = arith.constant 0 : index
    %c64 = arith.constant 64 : index
    %19 = vector.load %arg3[%c0_10, %c64] : memref<32x512xf32, #tpu.memory_space<vmem>>, vector<32x1xf32>
    %cst_11 = arith.constant dense<0.000000e+00> : vector<32x1xf32>
    %20 = tpu.matmul %18, %17, %cst_11 {dimension_numbers = #tpu.dot_dimension_numbers<[1], [0], [0], [1], [0, 0, 1, 1], [], []>} : vector<32x4xf32>, vector<4x1xf32>, vector<32x1xf32> -> vector<32x1xf32>
    %21 = arith.addf %20, %19 : vector<32x1xf32>
    %c0_12 = arith.constant 0 : index
    %c0_13 = arith.constant 0 : index
    %22 = vector.load %arg3[%c0_12, %c0_13] : memref<32x512xf32, #tpu.memory_space<vmem>>, vector<32x64xf32>
    %c0_14 = arith.constant 0 : index
    %c65 = arith.constant 65 : index
    %23 = vector.load %arg3[%c0_14, %c65] : memref<32x512xf32, #tpu.memory_space<vmem>>, vector<32x1xf32>
    %24 = tpu.concatenate %21, %6 in 0 : vector<32x1xf32>, vector<32x1xf32> -> vector<64x1xf32>
    %cst_15 = arith.constant dense<0.000000e+00> : vector<32x1xf32>
    %25 = tpu.matmul %22, %24, %cst_15 {dimension_numbers = #tpu.dot_dimension_numbers<[1], [0], [0], [1], [0, 0, 1, 1], [], []>} : vector<32x64xf32>, vector<64x1xf32>, vector<32x1xf32> -> vector<32x1xf32>
    %26 = arith.addf %25, %23 : vector<32x1xf32>
    %27 = arith.negf %26 : vector<32x1xf32>
    %28 = math.exp %27 : vector<32x1xf32>
    %cst_16 = arith.constant 1.000000e+00 : f32
    %29 = vector.broadcast %cst_16 : f32 to vector<32x1xf32>
    %30 = arith.addf %29, %28 : vector<32x1xf32>
    %31 = arith.divf %29, %30 : vector<32x1xf32>
    %32 = arith.mulf %26, %31 : vector<32x1xf32>
    %c0_17 = arith.constant 0 : index
    %c256 = arith.constant 256 : index
    %33 = vector.load %arg3[%c0_17, %c256] : memref<32x512xf32, #tpu.memory_space<vmem>>, vector<32x4xf32>
    %c0_18 = arith.constant 0 : index
    %c66 = arith.constant 66 : index
    %34 = vector.load %arg3[%c0_18, %c66] : memref<32x512xf32, #tpu.memory_space<vmem>>, vector<32x1xf32>
    %cst_19 = arith.constant dense<0.000000e+00> : vector<32x256xf32>
    %35 = tpu.matmul %33, %13, %cst_19 {dimension_numbers = #tpu.dot_dimension_numbers<[1], [0], [0], [1], [0, 0, 1, 1], [], []>} : vector<32x4xf32>, vector<4x256xf32>, vector<32x256xf32> -> vector<32x256xf32>
    %36 = arith.addf %34, %32 : vector<32x1xf32>
    %37 = vector.broadcast %36 : vector<32x1xf32> to vector<32x256xf32>
    %38 = arith.addf %35, %37 : vector<32x256xf32>
    %39 = arith.negf %38 : vector<32x256xf32>
    %40 = math.exp %39 : vector<32x256xf32>
    %cst_20 = arith.constant 1.000000e+00 : f32
    %41 = vector.broadcast %cst_20 : f32 to vector<32x256xf32>
    %42 = arith.addf %41, %40 : vector<32x256xf32>
    %43 = arith.divf %41, %42 : vector<32x256xf32>
    %44 = arith.mulf %38, %43 : vector<32x256xf32>
    %c0_21 = arith.constant 0 : index
    %c384 = arith.constant 384 : index
    %45 = vector.load %arg3[%c0_21, %c384] : memref<32x512xf32, #tpu.memory_space<vmem>>, vector<4x32xf32>
    %c0_22 = arith.constant 0 : index
    %c67 = arith.constant 67 : index
    %46 = vector.load %arg3[%c0_22, %c67] : memref<32x512xf32, #tpu.memory_space<vmem>>, vector<4x1xf32>
    %cst_23 = arith.constant dense<0.000000e+00> : vector<4x256xf32>
    %47 = tpu.matmul %45, %44, %cst_23 {dimension_numbers = #tpu.dot_dimension_numbers<[1], [0], [0], [1], [0, 0, 1, 1], [], []>} : vector<4x32xf32>, vector<32x256xf32>, vector<4x256xf32> -> vector<4x256xf32>
    %48 = vector.broadcast %46 : vector<4x1xf32> to vector<4x256xf32>
    %49 = arith.addf %47, %48 : vector<4x256xf32>
    %50 = arith.subf %3, %49 : vector<4x256xf32>
    %51 = arith.mulf %50, %50 : vector<4x256xf32>
    %cst_24 = arith.constant dense<0.000000e+00> : vector<4xf32>
    %52 = vector.multi_reduction <add>, %51, %cst_24 [1] : vector<4x256xf32> to vector<4xf32>
    %53 = vector.shape_cast %52 : vector<4xf32> to vector<4x1xf32>
    %cst_25 = arith.constant dense<0.000000e+00> : vector<1xf32>
    %54 = vector.multi_reduction <add>, %53, %cst_25 [0] : vector<4x1xf32> to vector<1xf32>
    %55 = vector.shape_cast %54 : vector<1xf32> to vector<1x1xf32>
    %cst_26 = arith.constant 9.765625E-4 : f32
    %56 = vector.broadcast %cst_26 : f32 to vector<1x1xf32>
    %57 = arith.mulf %55, %56 : vector<1x1xf32>
    %58 = vector.shape_cast %57 : vector<1x1xf32> to vector<1x1x1xf32>
    %59 = vector.shape_cast %58 : vector<1x1x1xf32> to vector<1x1x1xf32>
    %60 = vector.broadcast %59 : vector<1x1x1xf32> to vector<1x8x128xf32>
    %c0_27 = arith.constant 0 : index
    %c0_28 = arith.constant 0 : index
    %c0_29 = arith.constant 0 : index
    %61 = vector.load %arg5[%c0_27, %c0_28, %c0_29] : memref<1x8x128xf32, #tpu.memory_space<vmem>>, vector<1x8x128xf32>
    tpu.vector_store %arg5[%c0_27, %c0_28, %c0_29], %60 {strides = array<i32>} : memref<1x8x128xf32, #tpu.memory_space<vmem>>, vector<1x8x128xf32>,
    return
  }
  func.func @transform_0(%arg0: i32) -> (i32, i32, i32) {
    %c0_i32 = arith.constant 0 : i32
    %c0_i32_0 = arith.constant 0 : i32
    %c0_i32_1 = arith.constant 0 : i32
    return %arg0, %c0_i32, %c0_i32_0 : i32, i32, i32
  }
  func.func @transform_1(%arg0: i32) -> (i32, i32, i32) {
    %c0_i32 = arith.constant 0 : i32
    %c0_i32_0 = arith.constant 0 : i32
    %c0_i32_1 = arith.constant 0 : i32
    return %arg0, %c0_i32, %c0_i32_0 : i32, i32, i32
  }
  func.func @transform_2(%arg0: i32) -> (i32, i32) {
    %c0_i32 = arith.constant 0 : i32
    %c0_i32_0 = arith.constant 0 : i32
    %c0_i32_1 = arith.constant 0 : i32
    return %c0_i32, %c0_i32_0 : i32, i32
  }
  func.func @transform_3(%arg0: i32) -> (i32, i32, i32) {
    %c0_i32 = arith.constant 0 : i32
    %c0_i32_0 = arith.constant 0 : i32
    %c0_i32_1 = arith.constant 0 : i32
    return %arg0, %c0_i32, %c0_i32_0 : i32, i32, i32
  }
  func.func @transform_4(%arg0: i32) -> (i32, i32, i32) {
    %c0_i32 = arith.constant 0 : i32
    %c0_i32_0 = arith.constant 0 : i32
    %c0_i32_1 = arith.constant 0 : i32
    return %arg0, %c0_i32, %c0_i32_0 : i32, i32, i32
  }
}

</mosaic_0001>

<llo_original>
// kernel: diffae_training_loss.1
$region0: #{diffae_training_loss.1}
  #allocation0 [shape = 'u32[]', space=smem, size = 0x4, offset = 0x4, fixed_abs, tag = 'smem constant byte address 0x4 - core index']
  #allocation1 [shape = 'u32[144,128]{1,0:T(1,128)}', space=vmem, size = 0x12000, scoped, tag = 'internal scratch']
  %s0 = inlined_call_operand.vmem [shape: f32[2,4,256], index: 0, kind: input, shape index: {}]
  %s1 = inlined_call_operand.vmem [shape: f32[2,4,256], index: 1, kind: input, shape index: {}]
  %s2 = inlined_call_operand.vmem [shape: f32[32,512], index: 2, kind: input, shape index: {}]
  %s3 = inlined_call_operand.vmem [shape: f32[2,32,4], index: 3, kind: input, shape index: {}]
  %s4 = inlined_call_operand.vmem [shape: f32[2,8,128], index: 4, kind: output, shape index: {}]
  %s5 = sld [smem:[#allocation0]]
  $region49: #{diffae_training_loss.1} parent=0
    _
  %s7 = ssub.s32 1, %s5
  %s8 = scalar_select 0, %s7, %s5
  loop: start=0, step=1, limit=4
  $region2: #{diffae_training_loss.1} parent=0 // loop_pre_header
    _
  $region3: #{diffae_training_loss.1} parent=0 // loop_header
    %s10 = sphi 0, %s14
    %p11 = scmp.ge.s32.totalorder %s10, 4
    %s20 = sphi 0, %s22
    %s23 = sphi 0, %s20
    %s24 = sphi 0, %s23
    %s40 = sphi 0, %s24
    %s46 = sphi 0, %s48
    %s49 = sphi 0, %s46
    %s50 = sphi 0, %s49
    %s66 = sphi 0, %s50
    %s70 = sphi 0, %s70
    %s72 = sphi 0, %s70
    %s73 = sphi 0, %s72
    %s87 = sphi 0, %s73
    %s93 = sphi 0, %s95
    %s96 = sphi 0, %s93
    %s97 = sphi 0, %s96
    %s113 = sphi 0, %s97
    %s119 = sphi 0, %s121
    %s122 = sphi 0, %s119
    %s123 = sphi 0, %s122
    %s139 = sphi 0, %s123
  $region4: #{diffae_training_loss.1} parent=0 // loop_header_branch
    %13 = sbr.rel (%p11) target = $region8
  $region5: #{diffae_training_loss.1} parent=0 // loop_body
    %s15 = ssub.s32 %s10, 1
    %s16 = ssub.s32 %s10, 2
    %s17 = sadd.s32 %s10, 1
    %s18 = ssub.s32 %s10, %s17
    %p19 = scmp.eq.s32.totalorder %s18, 0
    %s21 = sadd.s32 %s20, 1
    %s22 = scalar_select %p19, %s20, %s21
    %p25 = pneg %p19
    %p26 = scmp.eq.s32.totalorder %s10, 1
    %p27 = por %p25, %p26
    %p28 = scmp.ne.s32.totalorder %s20, %s23
    %p29 = scmp.eq.s32.totalorder %s10, 0
    %p30 = por %p28, %p29
    %p31 = scmp.ne.s32.totalorder %s20, %s23
    %p32 = scmp.eq.s32.totalorder %s15, 1
    %p33 = por %p31, %p32
    %p34 = scmp.ne.s32.totalorder %s23, %s24
    %p35 = scmp.eq.s32.totalorder %s15, 0
    %p36 = por %p34, %p35
    %p37 = scmp.ne.s32.totalorder %s23, %s24
    %p38 = scmp.eq.s32.totalorder %s16, 1
    %p39 = por %p37, %p38
    %p41 = scmp.ne.s32.totalorder %s24, %s40
    %p42 = scmp.eq.s32.totalorder %s16, 0
    %p43 = por %p41, %p42
    %s44 = ssub.s32 %s10, %s17
    %p45 = scmp.eq.s32.totalorder %s44, 0
    %s47 = sadd.s32 %s46, 1
    %s48 = scalar_select %p45, %s46, %s47
    %p51 = pneg %p45
    %p52 = scmp.eq.s32.totalorder %s10, 1
    %p53 = por %p51, %p52
    %p54 = scmp.ne.s32.totalorder %s46, %s49
    %p55 = scmp.eq.s32.totalorder %s10, 0
    %p56 = por %p54, %p55
    %p57 = scmp.ne.s32.totalorder %s46, %s49
    %p58 = scmp.eq.s32.totalorder %s15, 1
    %p59 = por %p57, %p58
    %p60 = scmp.ne.s32.totalorder %s49, %s50
    %p61 = scmp.eq.s32.totalorder %s15, 0
    %p62 = por %p60, %p61
    %p63 = scmp.ne.s32.totalorder %s49, %s50
    %p64 = scmp.eq.s32.totalorder %s16, 1
    %p65 = por %p63, %p64
    %p67 = scmp.ne.s32.totalorder %s50, %s66
    %p68 = scmp.eq.s32.totalorder %s16, 0
    %p69 = por %p67, %p68
    %s71 = sadd.s32 %s70, 1
    %p74 = scmp.eq.s32.totalorder %s10, 1
    %p75 = scmp.ne.s32.totalorder %s70, %s72
    %p76 = scmp.eq.s32.totalorder %s10, 0
    %p77 = por %p75, %p76
    %p78 = scmp.ne.s32.totalorder %s70, %s72
    %p79 = scmp.eq.s32.totalorder %s15, 1
    %p80 = por %p78, %p79
    %p81 = scmp.ne.s32.totalorder %s72, %s73
    %p82 = scmp.eq.s32.totalorder %s15, 0
    %p83 = por %p81, %p82
    %p84 = scmp.ne.s32.totalorder %s72, %s73
    %p85 = scmp.eq.s32.totalorder %s16, 1
    %p86 = por %p84, %p85
    %p88 = scmp.ne.s32.totalorder %s73, %s87
    %p89 = scmp.eq.s32.totalorder %s16, 0
    %p90 = por %p88, %p89
    %s91 = ssub.s32 %s10, %s17
    %p92 = scmp.eq.s32.totalorder %s91, 0
    %s94 = sadd.s32 %s93, 1
    %s95 = scalar_select %p92, %s93, %s94
    %p98 = pneg %p92
    %p99 = scmp.eq.s32.totalorder %s10, 1
    %p100 = por %p98, %p99
    %p101 = scmp.ne.s32.totalorder %s93, %s96
    %p102 = scmp.eq.s32.totalorder %s10, 0
    %p103 = por %p101, %p102
    %p104 = scmp.ne.s32.totalorder %s93, %s96
    %p105 = scmp.eq.s32.totalorder %s15, 1
    %p106 = por %p104, %p105
    %p107 = scmp.ne.s32.totalorder %s96, %s97
    %p108 = scmp.eq.s32.totalorder %s15, 0
    %p109 = por %p107, %p108
    %p110 = scmp.ne.s32.totalorder %s96, %s97
    %p111 = scmp.eq.s32.totalorder %s16, 1
    %p112 = por %p110, %p111
    %p114 = scmp.ne.s32.totalorder %s97, %s113
    %p115 = scmp.eq.s32.totalorder %s16, 0
    %p116 = por %p114, %p115
    %s117 = ssub.s32 %s10, %s17
    %p118 = scmp.eq.s32.totalorder %s117, 0
    %s120 = sadd.s32 %s119, 1
    %s121 = scalar_select %p118, %s119, %s120
    %p124 = pneg %p118
    %p125 = scmp.eq.s32.totalorder %s10, 1
    %p126 = por %p124, %p125
    %p127 = scmp.ne.s32.totalorder %s119, %s122
    %p128 = scmp.eq.s32.totalorder %s10, 0
    %p129 = por %p127, %p128
    %p130 = scmp.ne.s32.totalorder %s119, %s122
    %p131 = scmp.eq.s32.totalorder %s15, 1
    %p132 = por %p130, %p131
    %p133 = scmp.ne.s32.totalorder %s122, %s123
    %p134 = scmp.eq.s32.totalorder %s15, 0
    %p135 = por %p133, %p134
    %p136 = scmp.ne.s32.totalorder %s122, %s123
    %p137 = scmp.eq.s32.totalorder %s16, 1
    %p138 = por %p136, %p137
    %p140 = scmp.ne.s32.totalorder %s123, %s139
    %p141 = scmp.eq.s32.totalorder %s16, 0
    %p142 = por %p140, %p141
    %p143 = scmp.le.s32.totalorder 1, %s10
    %p144 = scmp.lt.s32.totalorder %s10, 3
    %p145 = pnand %p143, %p144
    %p146 = pneg %p145
    // Predicated region
    $region9: #{diffae_training_loss.1} parent=5 // pred_check
      _
    $region10: #{diffae_training_loss.1} parent=5 // pred_check_branch
      %148 = sbr.rel (%p145) target = $region12
    $region11: #{diffae_training_loss.1} parent=5 // pred_region
      %s149 = ssub.s32 %s10, 1
      // Predicated region
      $region13: #{diffae_training_loss.1} parent=11 // pred_check
        %p150 = pneg %p83
      $region14: #{diffae_training_loss.1} parent=11 // pred_check_branch
        %152 = sbr.rel (%p150) target = $region16
      $region15: #{diffae_training_loss.1} parent=11 // pred_region
        _
      $region16: #{diffae_training_loss.1} parent=11 // pred_fallthru
        _
    $region12: #{diffae_training_loss.1} parent=5 // pred_fallthru
      _
    %p153 = scmp.lt.s32.totalorder %s10, 2
    // Predicated region
    $region17: #{diffae_training_loss.1} parent=5 // pred_check
      %p154 = pneg %p153
    $region18: #{diffae_training_loss.1} parent=5 // pred_check_branch
      %156 = sbr.rel (%p154) target = $region20
    $region19: #{diffae_training_loss.1} parent=5 // pred_region
      // Predicated region
      $region21: #{diffae_training_loss.1} parent=19 // pred_check
        %p157 = pneg %p30
      $region22: #{diffae_training_loss.1} parent=19 // pred_check_branch
        %159 = sbr.rel (%p157) target = $region24
      $region23: #{diffae_training_loss.1} parent=19 // pred_region
        %p160 = scmp.lt.s32.totalorder %s10, 1
        %s161 = scalar_select %p160, %s10, 1
        %s162 = smul.addr %s161, 2
        %s163 = smul.addr %s162, 4
        %s164 = scalar_lea.vmem %s0, %s163
      $region24: #{diffae_training_loss.1} parent=19 // pred_fallthru
        _
      // Predicated region
      $region25: #{diffae_training_loss.1} parent=19 // pred_check
        %p165 = pneg %p56
      $region26: #{diffae_training_loss.1} parent=19 // pred_check_branch
        %167 = sbr.rel (%p165) target = $region28
      $region27: #{diffae_training_loss.1} parent=19 // pred_region
        %p168 = scmp.lt.s32.totalorder %s10, 1
        %s169 = scalar_select %p168, %s10, 1
        %s170 = smul.addr %s169, 2
        %s171 = smul.addr %s170, 4
        %s172 = scalar_lea.vmem %s1, %s171
      $region28: #{diffae_training_loss.1} parent=19 // pred_fallthru
        _
      // Predicated region
      $region29: #{diffae_training_loss.1} parent=19 // pred_check
        %p173 = pneg %p103
      $region30: #{diffae_training_loss.1} parent=19 // pred_check_branch
        %175 = sbr.rel (%p173) target = $region32
      $region31: #{diffae_training_loss.1} parent=19 // pred_region
        %p176 = scmp.lt.s32.totalorder %s10, 1
        %s177 = scalar_select %p176, %s10, 1
        %s178 = smul.addr %s177, 4
        %s179 = smul.addr %s178, 8
        %s180 = scalar_lea.vmem %s3, %s179
      $region32: #{diffae_training_loss.1} parent=19 // pred_fallthru
        _
    $region20: #{diffae_training_loss.1} parent=5 // pred_fallthru
      _
    %p181 = scmp.le.s32.totalorder 1, %s10
    %p182 = scmp.lt.s32.totalorder %s10, 3
    %p183 = pnand %p181, %p182
    %p184 = pneg %p183
    // Predicated region
    $region33: #{diffae_training_loss.1} parent=5 // pred_check
      _
    $region34: #{diffae_training_loss.1} parent=5 // pred_check_branch
      %186 = sbr.rel (%p183) target = $region36
    $region35: #{diffae_training_loss.1} parent=5 // pred_region
      %s187 = ssub.s32 %s10, 1
      %p188 = scmp.lt.s32.totalorder %s15, 1
      %s189 = scalar_select %p188, %s15, 1
      %s190 = smul.addr %s189, 2
      %s191 = smul.addr %s190, 4
      %s192 = scalar_lea.vmem %s0, %s191
      %p193 = pneg %p36
      %p194 = pneg %p33
      %p195 = scmp.lt.s32.totalorder %s15, 1
      %s196 = scalar_select %p195, %s15, 1
      %s197 = smul.addr %s196, 2
      %s198 = smul.addr %s197, 4
      %s199 = scalar_lea.vmem %s1, %s198
      %p200 = pneg %p62
      %p201 = pneg %p59
      %p202 = pneg %p83
      %p203 = pneg %p80
      %p204 = scmp.lt.s32.totalorder %s15, 1
      %s205 = scalar_select %p204, %s15, 1
      %s206 = smul.addr %s205, 4
      %s207 = smul.addr %s206, 8
      %s208 = scalar_lea.vmem %s3, %s207
      %p209 = pneg %p109
      %p210 = pneg %p106
      %p211 = pneg %p135
      %p212 = pneg %p132
      %p213 = scmp.lt.s32.totalorder %s15, 1
      %s214 = scalar_select %p213, %s15, 1
      %s215 = smul.addr %s214, 8
      %s216 = scalar_lea.vmem %s4, %s215
      %p217 = scmp.lt.s32.totalorder %s15, 1
      %s218 = scalar_select %p217, %s15, 1
      %s219 = smul.addr %s218, 2
      %s220 = smul.addr %s219, 4
      %s221 = scalar_lea.vmem %s0, %s220
      %p222 = scmp.lt.s32.totalorder %s15, 1
      %s223 = scalar_select %p222, %s15, 1
      %s224 = smul.addr %s223, 2
      %s225 = smul.addr %s224, 4
      %s226 = scalar_lea.vmem %s1, %s225
      %p227 = scmp.lt.s32.totalorder %s15, 1
      %s228 = scalar_select %p227, %s15, 1
      %s229 = smul.addr %s228, 4
      %s230 = smul.addr %s229, 8
      %s231 = scalar_lea.vmem %s3, %s230
      %p232 = scmp.lt.s32.totalorder %s15, 1
      %s233 = scalar_select %p232, %s15, 1
      %s234 = smul.addr %s233, 8
      %s235 = scalar_lea.vmem %s4, %s234
      %v236 = vld [vmem:[%s221] sm:$0xff]
      %v237 = vld [vmem:[%s226] sm:$0xff]
      %v238 = vld [vmem:[%s231] sm:$0xff]
      %v239 = vld [vmem:[%s231 + $0x8] sm:$0xff]
      %v240 = vld [vmem:[%s231 + $0x10] sm:$0xff]
      %v241 = vld [vmem:[%s231 + $0x18] sm:$0xff]
      %243 = vset.pattern.permute.xlu0 1
      %244 = vperm.xlu0 %243, %v238
      %v245 = vpop.permute.xlu0 %244
      %v248 = vcombine.high %v236, %v236
      %v250 = vmul.f32 %v245, %v236
      %v251 = vmul.f32 %v245, %v248
      %252 = vset.pattern.permute.xlu0 2
      %253 = vperm.xlu0 %252, %v238
      %v254 = vpop.permute.xlu0 %253
      %v257 = vcombine.high %v237, %v237
      %v259 = vmul.f32 %v254, %v237
      %v260 = vmul.f32 %v254, %v257
      %v261 = vadd.f32 %v250, %v259
      %v262 = vadd.f32 %v251, %v260
      %vm263 = vcmask 1043456
      %v264 = vsel %vm263, %v236, 0.0
      %v265 = vsel %vm263, %v248, 0.0
      %v266 = vadd.f32 %v264, %v265
      %267 = vadd.xlane.f32.xlu0 %v266
      %v268 = vpop.xlane.xlu0 %267
      %v269 = vmul.f32 %v268, 0.00390625
      %v270 = vld [vmem:[%s2 + $0x8] sm:$0xff]
      %v271 = vld [vmem:[%s2 + $0x28] sm:$0xff]
      %v272 = vld [vmem:[%s2 + $0x48] sm:$0xff]
      %v273 = vld [vmem:[%s2 + $0x68] sm:$0xff]
      %v274 = vld [vmem:[%s2] sm:$0xff]
      %v275 = vld [vmem:[%s2 + $0x20] sm:$0xff]
      %v276 = vld [vmem:[%s2 + $0x40] sm:$0xff]
      %v277 = vld [vmem:[%s2 + $0x60] sm:$0xff]
      %282 = vrot.lane.b32.xlu0 %v274, 64
      %v283 = vpop.permute.xlu0 %282
      %284 = vrot.lane.b32.xlu0 %v275, 64
      %v285 = vpop.permute.xlu0 %284
      %286 = vrot.lane.b32.xlu0 %v276, 64
      %v287 = vpop.permute.xlu0 %286
      %288 = vrot.lane.b32.xlu0 %v277, 64
      %v289 = vpop.permute.xlu0 %288
      %vm294 = vcmask 31744
      %v296 = vsel %vm294, %v270, 0
      %v299 = vsel %vm294, %v271, 0
      %v302 = vsel %vm294, %v272, 0
      %v305 = vsel %vm294, %v273, 0
      %v308 = vsel %vm263, %v269, 0
      %310 = vmatprep.subr.mxu0 0.0
      %311 = vmatpush1.msra.mxu0 %v308
      %312 = vmatprep.subr.mxu0 0.0
      %313 = vmatpush1.msra.mxu0 0.0
      %314 = vmatprep.subr.mxu0 0.0
      %315 = vmatpush1.msra.mxu0 0.0
      %316 = vmatprep.subr.mxu0 0.0
      %317 = vmatpush1.msra.mxu0 0.0
      %318 = vmatprep.subr.mxu0 0.0
      %319 = vmatpush1.msra.mxu0 0.0
      %320 = vmatprep.subr.mxu0 0.0
      %321 = vmatpush1.msra.mxu0 0.0
      %322 = vmatprep.subr.mxu0 0.0
      %323 = vmatpush1.msra.mxu0 0.0
      %324 = vmatprep.subr.mxu0 0.0
      %325 = vmatpush1.msra.mxu0 0.0
      %326 = vmatprep.subr.mxu0 0.0
      %327 = vmatpush1.msra.mxu0 0.0
      %328 = vmatprep.subr.mxu0 0.0
      %329 = vmatpush1.msra.mxu0 0.0
      %330 = vmatprep.subr.mxu0 0.0
      %331 = vmatpush1.msra.mxu0 0.0
      %332 = vmatprep.subr.mxu0 0.0
      %333 = vmatpush1.msra.mxu0 0.0
      %334 = vmatprep.subr.mxu0 0.0
      %335 = vmatpush1.msra.mxu0 0.0
      %336 = vmatprep.subr.mxu0 0.0
      %337 = vmatpush1.msra.mxu0 0.0
      %338 = vmatprep.subr.mxu0 0.0
      %339 = vmatpush1.msra.mxu0 0.0
      %340 = vmatprep.subr.mxu0 0.0
      %341 = vmatpush1.msra.mxu0 0.0
      %342 = vmatprep.subr.mxu0 0.0
      %343 = vmatpush1.msra.mxu0 0.0
      %344 = vmatprep.subr.mxu0 0.0
      %345 = vmatpush1.msra.mxu0 0.0
      %346 = vmatprep.subr.mxu0 0.0
      %347 = vmatpush1.msra.mxu0 0.0
      %348 = vmatprep.subr.mxu0 0.0
      %349 = vmatpush1.msra.mxu0 0.0
      %350 = vmatprep.subr.mxu0 0.0
      %351 = vmatpush1.msra.mxu0 0.0
      %352 = vmatprep.subr.mxu0 0.0
      %353 = vmatpush1.msra.mxu0 0.0
      %354 = vmatprep.subr.mxu0 0.0
      %355 = vmatpush1.msra.mxu0 0.0
      %356 = vmatprep.subr.mxu0 0.0
      %357 = vmatpush1.msra.mxu0 0.0
      %358 = vmatprep.subr.mxu0 0.0
      %359 = vmatpush1.msra.mxu0 0.0
      %360 = vmatprep.subr.mxu0 0.0
      %361 = vmatpush1.msra.mxu0 0.0
      %362 = vmatprep.subr.mxu0 0.0
      %363 = vmatpush1.msra.mxu0 0.0
      %364 = vmatprep.subr.mxu0 0.0
      %365 = vmatpush1.msra.mxu0 0.0
      %366 = vmatprep.subr.mxu0 0.0
      %367 = vmatpush1.msra.mxu0 0.0
      %368 = vmatprep.subr.mxu0 0.0
      %369 = vmatpush1.msra.mxu0 0.0
      %370 = vmatprep.subr.mxu0 0.0
      %371 = vmatpush1.msra.mxu0 0.0
      %372 = vmatprep.subr.mxu0 0.0
      %373 = vmatpush1.msra.mxu0 0.0
      %374 = vmatprep.mubr.f32.mxu0 0.0
      %375 = vmatmul.mubr.f32.gmra.mrb[0].mxu0 %v296
      %v376 = vpop.f32.mrb[0].mxu0
      %v377 = vadd.f32 %v283, %v376
      %v378 = vpop.f32.mrb[0].mxu0
      %379 = vmatprep.mubr.f32.mxu0 0.0
      %380 = vmatmul.mubr.f32.gmra.mrb[0].mxu0 %v299
      %v381 = vpop.f32.mrb[0].mxu0
      %v382 = vadd.f32 %v285, %v381
      %v383 = vpop.f32.mrb[0].mxu0
      %384 = vmatprep.mubr.f32.mxu0 0.0
      %385 = vmatmul.mubr.f32.gmra.mrb[0].mxu0 %v302
      %v386 = vpop.f32.mrb[0].mxu0
      %v387 = vadd.f32 %v287, %v386
      %v388 = vpop.f32.mrb[0].mxu0
      %389 = vmatprep.mubr.f32.mxu0 0.0
      %390 = vmatmul.mubr.f32.gmra.mrb[0].mxu0 %v305
      %v391 = vpop.f32.mrb[0].mxu0
      %v392 = vadd.f32 %v289, %v391
      %v393 = vpop.f32.mrb[0].mxu0
      %394 = vdwg.mxu0
      %395 = vrot.lane.b32.xlu0 %v274, 63
      %v396 = vpop.permute.xlu0 %395
      %397 = vrot.lane.b32.xlu0 %v275, 63
      %v398 = vpop.permute.xlu0 %397
      %399 = vrot.lane.b32.xlu0 %v276, 63
      %v400 = vpop.permute.xlu0 %399
      %401 = vrot.lane.b32.xlu0 %v277, 63
      %v402 = vpop.permute.xlu0 %401
      %vm407 = vcmask 523264
      %v408 = vsel %vm407, %v274, 0
      %v410 = vsel %vm407, %v275, 0
      %v412 = vsel %vm407, %v276, 0
      %v414 = vsel %vm407, %v277, 0
      %416 = vmatprep.subr.mxu0 0.0
      %417 = vmatpush1.msra.mxu0 %v377
      %418 = vmatprep.subr.mxu0 0.0
      %419 = vmatpush1.msra.mxu0 %v382
      %420 = vmatprep.subr.mxu0 0.0
      %421 = vmatpush1.msra.mxu0 %v387
      %422 = vmatprep.subr.mxu0 0.0
      %423 = vmatpush1.msra.mxu0 %v392
      %424 = vmatprep.subr.mxu0 0.0
      %425 = vmatpush1.msra.mxu0 %v238
      %426 = vmatprep.subr.mxu0 0.0
      %427 = vmatpush1.msra.mxu0 %v239
      %428 = vmatprep.subr.mxu0 0.0
      %429 = vmatpush1.msra.mxu0 %v240
      %430 = vmatprep.subr.mxu0 0.0
      %431 = vmatpush1.msra.mxu0 %v241
      %432 = vmatprep.subr.mxu0 0.0
      %433 = vmatpush1.msra.mxu0 0.0
      %434 = vmatprep.subr.mxu0 0.0
      %435 = vmatpush1.msra.mxu0 0.0
      %436 = vmatprep.subr.mxu0 0.0
      %437 = vmatpush1.msra.mxu0 0.0
      %438 = vmatprep.subr.mxu0 0.0
      %439 = vmatpush1.msra.mxu0 0.0
      %440 = vmatprep.subr.mxu0 0.0
      %441 = vmatpush1.msra.mxu0 0.0
      %442 = vmatprep.subr.mxu0 0.0
      %443 = vmatpush1.msra.mxu0 0.0
      %444 = vmatprep.subr.mxu0 0.0
      %445 = vmatpush1.msra.mxu0 0.0
      %446 = vmatprep.subr.mxu0 0.0
      %447 = vmatpush1.msra.mxu0 0.0
      %448 = vmatprep.subr.mxu0 0.0
      %449 = vmatpush1.msra.mxu0 0.0
      %450 = vmatprep.subr.mxu0 0.0
      %451 = vmatpush1.msra.mxu0 0.0
      %452 = vmatprep.subr.mxu0 0.0
      %453 = vmatpush1.msra.mxu0 0.0
      %454 = vmatprep.subr.mxu0 0.0
      %455 = vmatpush1.msra.mxu0 0.0
      %456 = vmatprep.subr.mxu0 0.0
      %457 = vmatpush1.msra.mxu0 0.0
      %458 = vmatprep.subr.mxu0 0.0
      %459 = vmatpush1.msra.mxu0 0.0
      %460 = vmatprep.subr.mxu0 0.0
      %461 = vmatpush1.msra.mxu0 0.0
      %462 = vmatprep.subr.mxu0 0.0
      %463 = vmatpush1.msra.mxu0 0.0
      %464 = vmatprep.subr.mxu0 0.0
      %465 = vmatpush1.msra.mxu0 0.0
      %466 = vmatprep.subr.mxu0 0.0
      %467 = vmatpush1.msra.mxu0 0.0
      %468 = vmatprep.subr.mxu0 0.0
      %469 = vmatpush1.msra.mxu0 0.0
      %470 = vmatprep.subr.mxu0 0.0
      %471 = vmatpush1.msra.mxu0 0.0
      %472 = vmatprep.subr.mxu0 0.0
      %473 = vmatpush1.msra.mxu0 0.0
      %474 = vmatprep.subr.mxu0 0.0
      %475 = vmatpush1.msra.mxu0 0.0
      %476 = vmatprep.subr.mxu0 0.0
      %477 = vmatpush1.msra.mxu0 0.0
      %478 = vmatprep.subr.mxu0 0.0
      %479 = vmatpush1.msra.mxu0 0.0
      %480 = vmatprep.mubr.f32.mxu0 0.0
      %481 = vmatmul.mubr.f32.gmra.mrb[0].mxu0 %v408
      %v482 = vpop.f32.mrb[0].mxu0
      %v483 = vadd.f32 %v396, %v482
      %v484 = vpop.f32.mrb[0].mxu0
      %485 = vmatprep.mubr.f32.mxu0 0.0
      %486 = vmatmul.mubr.f32.gmra.mrb[0].mxu0 %v410
      %v487 = vpop.f32.mrb[0].mxu0
      %v488 = vadd.f32 %v398, %v487
      %v489 = vpop.f32.mrb[0].mxu0
      %490 = vmatprep.mubr.f32.mxu0 0.0
      %491 = vmatmul.mubr.f32.gmra.mrb[0].mxu0 %v412
      %v492 = vpop.f32.mrb[0].mxu0
      %v493 = vadd.f32 %v400, %v492
      %v494 = vpop.f32.mrb[0].mxu0
      %495 = vmatprep.mubr.f32.mxu0 0.0
      %496 = vmatmul.mubr.f32.gmra.mrb[0].mxu0 %v414
      %v497 = vpop.f32.mrb[0].mxu0
      %v498 = vadd.f32 %v402, %v497
      %v499 = vpop.f32.mrb[0].mxu0
      %500 = vdwg.mxu0
      %v501 = vxor.u32 %v483, 2147483648
      %v502 = vxor.u32 %v488, 2147483648
      %v503 = vxor.u32 %v493, 2147483648
      %v504 = vxor.u32 %v498, 2147483648
      %v505 = vmul.f32 %v501, 1.442695
      %v506 = vpow.pop %v505
      %v507 = vmul.f32 %v502, 1.442695
      %v508 = vpow.pop %v507
      %v509 = vmul.f32 %v503, 1.442695
      %v510 = vpow.pop %v509
      %v511 = vmul.f32 %v504, 1.442695
      %v512 = vpow.pop %v511
      %v513 = vadd.f32 %v506, 1.0
      %v514 = vadd.f32 %v508, 1.0
      %v515 = vadd.f32 %v510, 1.0
      %v516 = vadd.f32 %v512, 1.0
      %v517 = vrcp.pop %v513
      %v518 = vmul.f32 1.0, %v517
      %v519 = vrcp.pop %v514
      %v520 = vmul.f32 1.0, %v519
      %v521 = vrcp.pop %v515
      %v522 = vmul.f32 1.0, %v521
      %v523 = vrcp.pop %v516
      %v524 = vmul.f32 1.0, %v523
      %v525 = vmul.f32 %v483, %v518
      %v526 = vmul.f32 %v488, %v520
      %v527 = vmul.f32 %v493, %v522
      %v528 = vmul.f32 %v498, %v524
      %v529 = vld [vmem:[%s2 + $0x10] sm:$0xff]
      %v530 = vld [vmem:[%s2 + $0x30] sm:$0xff]
      %v531 = vld [vmem:[%s2 + $0x50] sm:$0xff]
      %v532 = vld [vmem:[%s2 + $0x70] sm:$0xff]
      %537 = vrot.lane.b32.xlu0 %v525, 66
      %v538 = vpop.permute.xlu0 %537
      %539 = vrot.lane.b32.xlu0 %v526, 66
      %v540 = vpop.permute.xlu0 %539
      %541 = vrot.lane.b32.xlu0 %v527, 66
      %v542 = vpop.permute.xlu0 %541
      %543 = vrot.lane.b32.xlu0 %v528, 66
      %v544 = vpop.permute.xlu0 %543
      %v549 = vadd.f32 %v274, %v538
      %v550 = vadd.f32 %v275, %v540
      %v551 = vadd.f32 %v276, %v542
      %v552 = vadd.f32 %v277, %v544
      %554 = vset.pattern.permute.xlu0 66
      %555 = vperm.xlu0 %554, %v549
      %v556 = vpop.permute.xlu0 %555
      %559 = vset.pattern.permute.xlu0 66
      %560 = vperm.xlu0 %559, %v550
      %v561 = vpop.permute.xlu0 %560
      %564 = vset.pattern.permute.xlu0 66
      %565 = vperm.xlu0 %564, %v551
      %v566 = vpop.permute.xlu0 %565
      %569 = vset.pattern.permute.xlu0 66
      %570 = vperm.xlu0 %569, %v552
      %v571 = vpop.permute.xlu0 %570
      %v574 = vsel %vm294, %v529, 0
      %v577 = vsel %vm294, %v530, 0
      %v580 = vsel %vm294, %v531, 0
      %v583 = vsel %vm294, %v532, 0
      %v586 = vsel %vm263, %v261, 0
      %v589 = vsel %vm263, %v262, 0
      %591 = vmatprep.subr.mxu0 %v589
      %592 = vmatpush1.msra.mxu0 %v586
      %593 = vmatprep.subr.mxu0 0.0
      %594 = vmatpush1.msra.mxu0 0.0
      %595 = vmatprep.subr.mxu0 0.0
      %596 = vmatpush1.msra.mxu0 0.0
      %597 = vmatprep.subr.mxu0 0.0
      %598 = vmatpush1.msra.mxu0 0.0
      %599 = vmatprep.subr.mxu0 0.0
      %600 = vmatpush1.msra.mxu0 0.0
      %601 = vmatprep.subr.mxu0 0.0
      %602 = vmatpush1.msra.mxu0 0.0
      %603 = vmatprep.subr.mxu0 0.0
      %604 = vmatpush1.msra.mxu0 0.0
      %605 = vmatprep.subr.mxu0 0.0
      %606 = vmatpush1.msra.mxu0 0.0
      %607 = vmatprep.subr.mxu0 0.0
      %608 = vmatpush1.msra.mxu0 0.0
      %609 = vmatprep.subr.mxu0 0.0
      %610 = vmatpush1.msra.mxu0 0.0
      %611 = vmatprep.subr.mxu0 0.0
      %612 = vmatpush1.msra.mxu0 0.0
      %613 = vmatprep.subr.mxu0 0.0
      %614 = vmatpush1.msra.mxu0 0.0
      %615 = vmatprep.subr.mxu0 0.0
      %616 = vmatpush1.msra.mxu0 0.0
      %617 = vmatprep.subr.mxu0 0.0
      %618 = vmatpush1.msra.mxu0 0.0
      %619 = vmatprep.subr.mxu0 0.0
      %620 = vmatpush1.msra.mxu0 0.0
      %621 = vmatprep.subr.mxu0 0.0
      %622 = vmatpush1.msra.mxu0 0.0
      %623 = vmatprep.subr.mxu0 0.0
      %624 = vmatpush1.msra.mxu0 0.0
      %625 = vmatprep.subr.mxu0 0.0
      %626 = vmatpush1.msra.mxu0 0.0
      %627 = vmatprep.subr.mxu0 0.0
      %628 = vmatpush1.msra.mxu0 0.0
      %629 = vmatprep.subr.mxu0 0.0
      %630 = vmatpush1.msra.mxu0 0.0
      %631 = vmatprep.subr.mxu0 0.0
      %632 = vmatpush1.msra.mxu0 0.0
      %633 = vmatprep.subr.mxu0 0.0
      %634 = vmatpush1.msra.mxu0 0.0
      %635 = vmatprep.subr.mxu0 0.0
      %636 = vmatpush1.msra.mxu0 0.0
      %637 = vmatprep.subr.mxu0 0.0
      %638 = vmatpush1.msra.mxu0 0.0
      %639 = vmatprep.subr.mxu0 0.0
      %640 = vmatpush1.msra.mxu0 0.0
      %641 = vmatprep.subr.mxu0 0.0
      %642 = vmatpush1.msra.mxu0 0.0
      %643 = vmatprep.subr.mxu0 0.0
      %644 = vmatpush1.msra.mxu0 0.0
      %645 = vmatprep.subr.mxu0 0.0
      %646 = vmatpush1.msra.mxu0 0.0
      %647 = vmatprep.subr.mxu0 0.0
      %648 = vmatpush1.msra.mxu0 0.0
      %649 = vmatprep.subr.mxu0 0.0
      %650 = vmatpush1.msra.mxu0 0.0
      %651 = vmatprep.subr.mxu0 0.0
      %652 = vmatpush1.msra.mxu0 0.0
      %653 = vmatprep.subr.mxu0 0.0
      %654 = vmatpush1.msra.mxu0 0.0
      %655 = vmatprep.mubr.f32.mxu0 0.0
      %656 = vmatmul.mubr.f32.gmra.mrb[0].mxu0 %v574
      %v657 = vpop.f32.mrb[0].mxu0
      %v658 = vadd.f32 %v556, %v657
      %v659 = vpop.f32.mrb[0].mxu0
      %v660 = vadd.f32 %v556, %v659
      %661 = vmatprep.mubr.f32.mxu0 0.0
      %662 = vmatmul.mubr.f32.gmra.mrb[0].mxu0 %v577
      %v663 = vpop.f32.mrb[0].mxu0
      %v664 = vadd.f32 %v561, %v663
      %v665 = vpop.f32.mrb[0].mxu0
      %v666 = vadd.f32 %v561, %v665
      %667 = vmatprep.mubr.f32.mxu0 0.0
      %668 = vmatmul.mubr.f32.gmra.mrb[0].mxu0 %v580
      %v669 = vpop.f32.mrb[0].mxu0
      %v670 = vadd.f32 %v566, %v669
      %v671 = vpop.f32.mrb[0].mxu0
      %v672 = vadd.f32 %v566, %v671
      %673 = vmatprep.mubr.f32.mxu0 0.0
      %674 = vmatmul.mubr.f32.gmra.mrb[0].mxu0 %v583
      %v675 = vpop.f32.mrb[0].mxu0
      %v676 = vadd.f32 %v571, %v675
      %v677 = vpop.f32.mrb[0].mxu0
      %v678 = vadd.f32 %v571, %v677
      %679 = vdwg.mxu0
      %v680 = vxor.u32 %v658, 2147483648
      %v681 = vxor.u32 %v660, 2147483648
      %v682 = vxor.u32 %v664, 2147483648
      %v683 = vxor.u32 %v666, 2147483648
      %v684 = vxor.u32 %v670, 2147483648
      %v685 = vxor.u32 %v672, 2147483648
      %v686 = vxor.u32 %v676, 2147483648
      %v687 = vxor.u32 %v678, 2147483648
      %v688 = vmul.f32 %v680, 1.442695
      %v689 = vpow.pop %v688
      %v690 = vmul.f32 %v681, 1.442695
      %v691 = vpow.pop %v690
      %v692 = vmul.f32 %v682, 1.442695
      %v693 = vpow.pop %v692
      %v694 = vmul.f32 %v683, 1.442695
      %v695 = vpow.pop %v694
      %v696 = vmul.f32 %v684, 1.442695
      %v697 = vpow.pop %v696
      %v698 = vmul.f32 %v685, 1.442695
      %v699 = vpow.pop %v698
      %v700 = vmul.f32 %v686, 1.442695
      %v701 = vpow.pop %v700
      %v702 = vmul.f32 %v687, 1.442695
      %v703 = vpow.pop %v702
      %v704 = vadd.f32 %v689, 1.0
      %v705 = vadd.f32 %v691, 1.0
      %v706 = vadd.f32 %v693, 1.0
      %v707 = vadd.f32 %v695, 1.0
      %v708 = vadd.f32 %v697, 1.0
      %v709 = vadd.f32 %v699, 1.0
      %v710 = vadd.f32 %v701, 1.0
      %v711 = vadd.f32 %v703, 1.0
      %v712 = vrcp.pop %v704
      %v713 = vmul.f32 1.0, %v712
      %v714 = vrcp.pop %v705
      %v715 = vmul.f32 1.0, %v714
      %v716 = vrcp.pop %v706
      %v717 = vmul.f32 1.0, %v716
      %v718 = vrcp.pop %v707
      %v719 = vmul.f32 1.0, %v718
      %v720 = vrcp.pop %v708
      %v721 = vmul.f32 1.0, %v720
      %v722 = vrcp.pop %v709
      %v723 = vmul.f32 1.0, %v722
      %v724 = vrcp.pop %v710
      %v725 = vmul.f32 1.0, %v724
      %v726 = vrcp.pop %v711
      %v727 = vmul.f32 1.0, %v726
      %v728 = vmul.f32 %v658, %v713
      %v729 = vmul.f32 %v660, %v715
      %v730 = vmul.f32 %v664, %v717
      %v731 = vmul.f32 %v666, %v719
      %v732 = vmul.f32 %v670, %v721
      %v733 = vmul.f32 %v672, %v723
      %v734 = vmul.f32 %v676, %v725
      %v735 = vmul.f32 %v678, %v727
      %v736 = vld [vmem:[%s2 + $0x18] sm:$0xf]
      %v737 = vld [vmem:[%s2] sm:$0xf]
      %739 = vset.pattern.permute.xlu0 67
      %740 = vperm.xlu0 %739, %v737
      %v741 = vpop.permute.xlu0 %740
      %vm743 = vcmask 261120
      %v745 = vsel %vm743, %v736, 0
      %747 = vmatprep.subr.mxu0 %v729
      %748 = vmatpush1.msra.mxu0 %v728
      %749 = vmatprep.subr.mxu0 %v731
      %750 = vmatpush1.msra.mxu0 %v730
      %751 = vmatprep.subr.mxu0 %v733
      %752 = vmatpush1.msra.mxu0 %v732
      %753 = vmatprep.subr.mxu0 %v735
      %754 = vmatpush1.msra.mxu0 %v734
      %755 = vmatprep.subr.mxu0 0.0
      %756 = vmatpush1.msra.mxu0 0.0
      %757 = vmatprep.subr.mxu0 0.0
      %758 = vmatpush1.msra.mxu0 0.0
      %759 = vmatprep.subr.mxu0 0.0
      %760 = vmatpush1.msra.mxu0 0.0
      %761 = vmatprep.subr.mxu0 0.0
      %762 = vmatpush1.msra.mxu0 0.0
      %763 = vmatprep.subr.mxu0 0.0
      %764 = vmatpush1.msra.mxu0 0.0
      %765 = vmatprep.subr.mxu0 0.0
      %766 = vmatpush1.msra.mxu0 0.0
      %767 = vmatprep.subr.mxu0 0.0
      %768 = vmatpush1.msra.mxu0 0.0
      %769 = vmatprep.subr.mxu0 0.0
      %770 = vmatpush1.msra.mxu0 0.0
      %771 = vmatprep.subr.mxu0 0.0
      %772 = vmatpush1.msra.mxu0 0.0
      %773 = vmatprep.subr.mxu0 0.0
      %774 = vmatpush1.msra.mxu0 0.0
      %775 = vmatprep.subr.mxu0 0.0
      %776 = vmatpush1.msra.mxu0 0.0
      %777 = vmatprep.subr.mxu0 0.0
      %778 = vmatpush1.msra.mxu0 0.0
      %779 = vmatprep.subr.mxu0 0.0
      %780 = vmatpush1.msra.mxu0 0.0
      %781 = vmatprep.subr.mxu0 0.0
      %782 = vmatpush1.msra.mxu0 0.0
      %783 = vmatprep.subr.mxu0 0.0
      %784 = vmatpush1.msra.mxu0 0.0
      %785 = vmatprep.subr.mxu0 0.0
      %786 = vmatpush1.msra.mxu0 0.0
      %787 = vmatprep.subr.mxu0 0.0
      %788 = vmatpush1.msra.mxu0 0.0
      %789 = vmatprep.subr.mxu0 0.0
      %790 = vmatpush1.msra.mxu0 0.0
      %791 = vmatprep.subr.mxu0 0.0
      %792 = vmatpush1.msra.mxu0 0.0
      %793 = vmatprep.subr.mxu0 0.0
      %794 = vmatpush1.msra.mxu0 0.0
      %795 = vmatprep.subr.mxu0 0.0
      %796 = vmatpush1.msra.mxu0 0.0
      %797 = vmatprep.subr.mxu0 0.0
      %798 = vmatpush1.msra.mxu0 0.0
      %799 = vmatprep.subr.mxu0 0.0
      %800 = vmatpush1.msra.mxu0 0.0
      %801 = vmatprep.subr.mxu0 0.0
      %802 = vmatpush1.msra.mxu0 0.0
      %803 = vmatprep.subr.mxu0 0.0
      %804 = vmatpush1.msra.mxu0 0.0
      %805 = vmatprep.subr.mxu0 0.0
      %806 = vmatpush1.msra.mxu0 0.0
      %807 = vmatprep.subr.mxu0 0.0
      %808 = vmatpush1.msra.mxu0 0.0
      %809 = vmatprep.subr.mxu0 0.0
      %810 = vmatpush1.msra.mxu0 0.0
      %811 = vmatprep.mubr.f32.mxu0 0.0
      %812 = vmatmul.mubr.f32.gmra.mrb[0].mxu0 %v745
      %v813 = vpop.f32.mrb[0].mxu0
      %v814 = vadd.f32 %v741, %v813
      %v815 = vpop.f32.mrb[0].mxu0
      %v816 = vadd.f32 %v741, %v815
      %817 = vdwg.mxu0
      %v820 = vcombine.low %v814, %v816
      %v822 = vsub.f32 %v237, %v820
      %v823 = vmul.f32 %v822, %v822
      %v825 = vcombine.high %v823, %v823
      %v827 = vsel %vm263, %v823, 0.0
      %v828 = vsel %vm263, %v825, 0.0
      %v829 = vadd.f32 %v827, %v828
      %830 = vadd.xlane.f32.xlu0 %v829
      %v831 = vpop.xlane.xlu0 %830
      %v832 = vsel %vm263, %v831, 0.0
      %v833 = vrot.slane %v832, 4
      %v834 = vadd.f32 %v832, %v833
      %v835 = vrot.slane %v834, 2
      %v836 = vadd.f32 %v834, %v835
      %v837 = vrot.slane %v836, 1
      %v838 = vadd.f32 %v836, %v837
      %v839 = vmul.f32 %v838, 0.0009765625
      %840 = vst [vmem:[%s235] sm:$0xff] %v839
      %p841 = scmp.lt.s32.totalorder %s15, 1
      %s842 = scalar_select %p841, %s15, 1
      %s843 = smul.addr %s842, 8
      %s844 = scalar_lea.vmem %s4, %s843
      // Predicated region
      $region37: #{diffae_training_loss.1} parent=35 // pred_check
        %p845 = pneg %p132
      $region38: #{diffae_training_loss.1} parent=35 // pred_check_branch
        %847 = sbr.rel (%p845) target = $region40
      $region39: #{diffae_training_loss.1} parent=35 // pred_region
        _
      $region40: #{diffae_training_loss.1} parent=35 // pred_fallthru
        _
    $region36: #{diffae_training_loss.1} parent=5 // pred_fallthru
      _
    %p848 = scmp.le.s32.totalorder 2, %s10
    // Predicated region
    $region41: #{diffae_training_loss.1} parent=5 // pred_check
      %p849 = pneg %p848
    $region42: #{diffae_training_loss.1} parent=5 // pred_check_branch
      %851 = sbr.rel (%p849) target = $region44
    $region43: #{diffae_training_loss.1} parent=5 // pred_region
      %s852 = ssub.s32 %s10, 2
      // Predicated region
      $region45: #{diffae_training_loss.1} parent=43 // pred_check
        %p853 = pneg %p138
      $region46: #{diffae_training_loss.1} parent=43 // pred_check_branch
        %855 = sbr.rel (%p853) target = $region48
      $region47: #{diffae_training_loss.1} parent=43 // pred_region
        %p856 = scmp.lt.s32.totalorder %s16, 1
        %s857 = scalar_select %p856, %s16, 1
        %s858 = smul.addr %s857, 8
        %s859 = scalar_lea.vmem %s4, %s858
      $region48: #{diffae_training_loss.1} parent=43 // pred_fallthru
        _
    $region44: #{diffae_training_loss.1} parent=5 // pred_fallthru
      _
  $region6: #{diffae_training_loss.1} parent=0 // loop_footer
    %s14 = sadd.s32 1, %s10
  $region7: #{diffae_training_loss.1} parent=0 // loop_footer_branch
    %9 = sbr.rel target = $region3
  $region8: #{diffae_training_loss.1} parent=0 // loop_exit
    _

</llo_original>
